<compile_context>
chip_gen: v7x
topology: tpu7x:2x2x1
jax: 0.10.0
libtpu: 0.0.40
codegen_flags: <defaults>
</compile_context>

<pallas_src>
import jax
import jax.numpy as jnp
from jax.experimental import pallas as pl
from jax.experimental.pallas import tpu as pltpu


# ------------------------- dimensions -------------------------

D_IN, D_H1, D_EMB = 32, 64, 32
D_HID, D_A, D_B = 16, 8, 4
NUM_EMBEDDINGS = 10

# lane-dense output slab layout: [emb(32) | hid(16) | a(8) | b(4) | pad(68)]
SLAB_W = 128
_OFF_EMB = 0
_OFF_HID = _OFF_EMB + D_EMB            # 32
_OFF_A = _OFF_HID + D_HID              # 48
_OFF_B = _OFF_A + D_A                  # 56
_USED = _OFF_B + D_B                   # 60


def _round_up(x, m):
    return ((x + m - 1) // m) * m


# ------------------------- kernel -------------------------

def _l2_normalize(x, eps=1e-12):
    # Matches torch.nn.functional.normalize(x, p=2, dim=1, eps=1e-12):
    #   x / max(||x||, eps) == x * rsqrt(max(sum(x^2), eps^2))
    # rsqrt lands on the (otherwise idle) EUP slot instead of VPU sqrt + divide.
    sumsq = jnp.sum(x * x, axis=-1, keepdims=True)
    return x * jax.lax.rsqrt(jnp.maximum(sumsq, eps * eps))


def _dense_relu(h_f32, w_bf16_ref, b_f32_ref):
    # Weights are already bf16 (pre-cast once in the wrapper); only the activation is cast
    # per layer. f32 accumulate, f32 bias-add / ReLU epilogue.
    y = jnp.dot(h_f32.astype(jnp.bfloat16), w_bf16_ref[...],
                preferred_element_type=jnp.float32)
    return jnp.maximum(y + b_f32_ref[...], 0.0)


def hydra_kernel(
    x_ref,                                         # (TB, 32) f32 features
    w_e1_ref, b_e1_ref, w_e2_ref, b_e2_ref,        # encoder
    w_h_ref, b_h_ref,                              # "_hidden" head
    w_ab_ref, b_ab_ref,                            # fused "head_a" + "_group/head_b"
    out_ref,                                       # (TB, 128) lane-dense bf16 slab
):
    x = x_ref[...]
    tb = x.shape[0]

    # --- encoder: Linear(32->64)+ReLU, Linear(64->32)+ReLU, Normalize ---
    h1 = _dense_relu(x, w_e1_ref, b_e1_ref)
    h2 = _dense_relu(h1, w_e2_ref, b_e2_ref)
    embeddings = _l2_normalize(h2)

    # --- "_hidden" head: Linear(32->16)+ReLU ; feeds the sibling heads ---
    hid = _dense_relu(embeddings, w_h_ref, b_h_ref)

    # --- fused "head_a" (16->8, normalized) + "_group/head_b" (16->4) ---
    ab = _dense_relu(hid, w_ab_ref, b_ab_ref)      # (TB, 12)
    a = _l2_normalize(ab[:, :D_A])
    b = ab[:, D_A:D_A + D_B]

    # --- single full-width (unmasked) bf16 store of the packed slab ---
    pad = jnp.zeros((tb, SLAB_W - _USED), jnp.float32)
    out_ref[...] = jnp.concatenate([embeddings, hid, a, b, pad],
                                   axis=-1).astype(out_ref.dtype)


# ------------------------- wrapper -------------------------

def init_params(key):
    ks = jax.random.split(key, 7)
    s = 0.1
    return dict(
        w_e1=jax.random.normal(ks[0], (D_IN, D_H1), jnp.float32) * s,
        b_e1=jnp.zeros((1, D_H1), jnp.float32),
        w_e2=jax.random.normal(ks[1], (D_H1, D_EMB), jnp.float32) * s,
        b_e2=jnp.zeros((1, D_EMB), jnp.float32),
        w_h=jax.random.normal(ks[2], (D_EMB, D_HID), jnp.float32) * s,
        b_h=jnp.zeros((1, D_HID), jnp.float32),
        w_a=jax.random.normal(ks[3], (D_HID, D_A), jnp.float32) * s,
        b_a=jnp.zeros((1, D_A), jnp.float32),
        w_b=jax.random.normal(ks[4], (D_HID, D_B), jnp.float32) * s,
        b_b=jnp.zeros((1, D_B), jnp.float32),
        emb_tbl=jax.random.normal(ks[5], (NUM_EMBEDDINGS, D_EMB), jnp.float32) * s,
    )


def hydra_forward(features, user_ids, params, *, tb=2048):
    """Hydra.forward(features, user=user_ids) -> dict of outputs."""
    B = features.shape[0]

    # Batch-tile selection:
    #  * tb=2048 default amortizes the ~0.35 us per-grid-step overhead over many rows and
    #    gives each of the chained small matmuls long M (hides MXU fill/drain).
    #  * Cap TB so the "parallel" grid axis has >= 2 steps whenever the batch allows it, so
    #    both v7x TensorCores get work; v5e/v6e (1 TC) just see deeper pipelining.
    #  * Tiny batches use the full (sublane-unaligned-but-full-extent) batch as one block.
    if B <= 8:
        TB = B
    else:
        TB = min(tb, _round_up(B, 8))
        TB = min(TB, max(8, _round_up(pl.cdiv(B, 2), 8)))
    grid = (pl.cdiv(B, TB),)

    # Pre-cast dense weights to bf16 ONCE (VMEM-resident constants); biases stay f32.
    # Sibling heads (same LHS) fused into one matmul: (16, 8+4) weight, (1, 12) bias.
    w_e1 = params["w_e1"].astype(jnp.bfloat16)
    w_e2 = params["w_e2"].astype(jnp.bfloat16)
    w_h = params["w_h"].astype(jnp.bfloat16)
    w_ab = jnp.concatenate([params["w_a"], params["w_b"]], axis=1).astype(jnp.bfloat16)
    b_ab = jnp.concatenate([params["b_a"], params["b_b"]], axis=1)

    def row_spec(d):            # blocked along the batch axis
        return pl.BlockSpec((TB, d), lambda i: (i, 0))

    def const_spec(arr):        # full array, VMEM-resident across all grid steps
        return pl.BlockSpec(arr.shape, lambda i: (0, 0))

    consts = (
        w_e1, params["b_e1"],
        w_e2, params["b_e2"],
        w_h, params["b_h"],
        w_ab, b_ab,
    )

    slab = pl.pallas_call(
        hydra_kernel,
        out_shape=jax.ShapeDtypeStruct((B, SLAB_W), jnp.bfloat16),
        grid=grid,
        in_specs=[row_spec(D_IN)] + [const_spec(a) for a in consts],
        out_specs=row_spec(SLAB_W),
        compiler_params=pltpu.CompilerParams(
            dimension_semantics=("parallel",)),
    )(features, *consts)

    # Embedder "user": a 10x32 table gather is trivial, encoder-independent XLA work; doing
    # it here keeps it exact f32 and removes the lane-padded id block from the kernel.
    user_emb = params["emb_tbl"][user_ids.astype(jnp.int32)]

    # Split the lane-dense slab back into the flattened Hydra output dict
    # (flatten_dict uses "/" separator; the "_hidden" branch is stored under key "").
    # Downstream consumers that can take the packed bf16 slab directly should; the split
    # here is just to present the reference dict interface.
    def piece(off, d):
        return slab[:, off:off + d].astype(jnp.float32)

    return {
        "features": features,
        "embeddings": piece(_OFF_EMB, D_EMB),
        "": piece(_OFF_HID, D_HID),
        "head_a": piece(_OFF_A, D_A),
        "_group/head_b": piece(_OFF_B, D_B),
        "user_embeddings": user_emb,
    }


# ------------------------- pure-JAX reference -------------------------

def hydra_reference(features, user_ids, params):
    def lin(h, w, b):
        return jnp.maximum(h @ w + b, 0.0)

    def nrm(v, eps=1e-12):
        return v / jnp.maximum(jnp.linalg.norm(v, axis=-1, keepdims=True), eps)

    e = nrm(lin(lin(features, params["w_e1"], params["b_e1"]),
                params["w_e2"], params["b_e2"]))
    h = lin(e, params["w_h"], params["b_h"])
    a = nrm(lin(h, params["w_a"], params["b_a"]))
    b = lin(h, params["w_b"], params["b_b"])
    u = params["emb_tbl"][user_ids]
    return e, h, a, b, u


def _check(out, refs):
    e_ref, h_ref, a_ref, b_ref, u_ref = refs
    # bf16 MXU + bf16 output slab -> 5e-2 tolerance on the dense heads.
    assert bool(jnp.allclose(out["embeddings"], e_ref, atol=5e-2, rtol=5e-2))
    assert bool(jnp.allclose(out[""], h_ref, atol=5e-2, rtol=5e-2))
    assert bool(jnp.allclose(out["head_a"], a_ref, atol=5e-2, rtol=5e-2))
    assert bool(jnp.allclose(out["_group/head_b"], b_ref, atol=5e-2, rtol=5e-2))
    assert bool(jnp.allclose(out["user_embeddings"], u_ref, atol=1e-6))  # exact gather


# ------------------------- main -------------------------

if __name__ == "__main__":
    key = jax.random.PRNGKey(0)
    k_feat, k_idx, k_params = jax.random.split(key, 3)
    params = init_params(k_params)

    # small deterministic case (single full-batch block)
    B = 2
    features = jax.random.normal(k_feat, (B, D_IN), jnp.float32)
    user_ids = jax.random.randint(k_idx, (B,), 0, NUM_EMBEDDINGS, jnp.int32)

    out = hydra_forward(features, user_ids, params)
    jax.block_until_ready(out)

    assert out["embeddings"].shape == (B, D_EMB)
    assert out[""].shape == (B, D_HID)
    assert out["head_a"].shape == (B, D_A)
    assert out["_group/head_b"].shape == (B, D_B)
    assert out["user_embeddings"].shape == (B, D_EMB)
    _check(out, hydra_reference(features, user_ids, params))

    # secondary case exercising the tiled path (>= 2 grid steps, partial last block)
    B2 = 100
    k_feat2, k_idx2 = jax.random.split(jax.random.PRNGKey(1), 2)
    features2 = jax.random.normal(k_feat2, (B2, D_IN), jnp.float32)
    user_ids2 = jax.random.randint(k_idx2, (B2,), 0, NUM_EMBEDDINGS, jnp.int32)
    out2 = hydra_forward(features2, user_ids2, params)
    jax.block_until_ready(out2)
    _check(out2, hydra_reference(features2, user_ids2, params))

    print("KERNEL_OK")
</pallas_src>

<mosaic_0001>
module attributes {stable_mosaic.version = 11 : i64} {
  func.func @hydra_kernel(%arg0: i32, %arg1: memref<2x32xf32, #tpu.memory_space<vmem>>, %arg2: memref<32x64xbf16, #tpu.memory_space<vmem>>, %arg3: memref<1x64xf32, #tpu.memory_space<vmem>>, %arg4: memref<64x32xbf16, #tpu.memory_space<vmem>>, %arg5: memref<1x32xf32, #tpu.memory_space<vmem>>, %arg6: memref<32x16xbf16, #tpu.memory_space<vmem>>, %arg7: memref<1x16xf32, #tpu.memory_space<vmem>>, %arg8: memref<16x12xbf16, #tpu.memory_space<vmem>>, %arg9: memref<1x12xf32, #tpu.memory_space<vmem>>, %arg10: memref<2x128xbf16, #tpu.memory_space<vmem>>) attributes {dimension_semantics = [#tpu.dimension_semantics<parallel>], iteration_bounds = array<i64: 1>, scalar_prefetch = 0 : i64, scratch_operands = 0 : i64, tpu.core_type = #tpu.core_type<tc>, window_params = [{transform_indices = @transform_0, window_bounds = array<i64: 2, 32>}, {pipeline_mode = #tpu.pipeline_mode<synchronous>, transform_indices = @transform_1, window_bounds = array<i64: 32, 64>}, {pipeline_mode = #tpu.pipeline_mode<synchronous>, transform_indices = @transform_2, window_bounds = array<i64: 1, 64>}, {pipeline_mode = #tpu.pipeline_mode<synchronous>, transform_indices = @transform_3, window_bounds = array<i64: 64, 32>}, {pipeline_mode = #tpu.pipeline_mode<synchronous>, transform_indices = @transform_4, window_bounds = array<i64: 1, 32>}, {pipeline_mode = #tpu.pipeline_mode<synchronous>, transform_indices = @transform_5, window_bounds = array<i64: 32, 16>}, {pipeline_mode = #tpu.pipeline_mode<synchronous>, transform_indices = @transform_6, window_bounds = array<i64: 1, 16>}, {pipeline_mode = #tpu.pipeline_mode<synchronous>, transform_indices = @transform_7, window_bounds = array<i64: 16, 12>}, {pipeline_mode = #tpu.pipeline_mode<synchronous>, transform_indices = @transform_8, window_bounds = array<i64: 1, 12>}, {transform_indices = @transform_9, window_bounds = array<i64: 2, 128>}]} {
    %c0 = arith.constant 0 : index
    %c0_0 = arith.constant 0 : index
    %0 = vector.load %arg1[%c0, %c0_0] : memref<2x32xf32, #tpu.memory_space<vmem>>, vector<2x32xf32>
    %1 = arith.truncf %0 : vector<2x32xf32> to vector<2x32xbf16>
    %c0_1 = arith.constant 0 : index
    %c0_2 = arith.constant 0 : index
    %2 = vector.load %arg2[%c0_1, %c0_2] : memref<32x64xbf16, #tpu.memory_space<vmem>>, vector<32x64xbf16>
    %cst = arith.constant dense<0.000000e+00> : vector<2x64xf32>
    %3 = tpu.matmul %1, %2, %cst {dimension_numbers = #tpu.dot_dimension_numbers<[1], [0], [0], [1], [0, 0, 1, 1], [], []>} : vector<2x32xbf16>, vector<32x64xbf16>, vector<2x64xf32> -> vector<2x64xf32>
    %c0_3 = arith.constant 0 : index
    %c0_4 = arith.constant 0 : index
    %4 = vector.load %arg3[%c0_3, %c0_4] : memref<1x64xf32, #tpu.memory_space<vmem>>, vector<1x64xf32>
    %5 = vector.broadcast %4 : vector<1x64xf32> to vector<2x64xf32>
    %6 = arith.addf %3, %5 : vector<2x64xf32>
    %cst_5 = arith.constant 0.000000e+00 : f32
    %7 = vector.broadcast %cst_5 : f32 to vector<2x64xf32>
    %8 = arith.maximumf %6, %7 : vector<2x64xf32>
    %9 = arith.truncf %8 : vector<2x64xf32> to vector<2x64xbf16>
    %c0_6 = arith.constant 0 : index
    %c0_7 = arith.constant 0 : index
    %10 = vector.load %arg4[%c0_6, %c0_7] : memref<64x32xbf16, #tpu.memory_space<vmem>>, vector<64x32xbf16>
    %cst_8 = arith.constant dense<0.000000e+00> : vector<2x32xf32>
    %11 = tpu.matmul %9, %10, %cst_8 {dimension_numbers = #tpu.dot_dimension_numbers<[1], [0], [0], [1], [0, 0, 1, 1], [], []>} : vector<2x64xbf16>, vector<64x32xbf16>, vector<2x32xf32> -> vector<2x32xf32>
    %c0_9 = arith.constant 0 : index
    %c0_10 = arith.constant 0 : index
    %12 = vector.load %arg5[%c0_9, %c0_10] : memref<1x32xf32, #tpu.memory_space<vmem>>, vector<1x32xf32>
    %13 = vector.broadcast %12 : vector<1x32xf32> to vector<2x32xf32>
    %14 = arith.addf %11, %13 : vector<2x32xf32>
    %cst_11 = arith.constant 0.000000e+00 : f32
    %15 = vector.broadcast %cst_11 : f32 to vector<2x32xf32>
    %16 = arith.maximumf %14, %15 : vector<2x32xf32>
    %17 = arith.mulf %16, %16 : vector<2x32xf32>
    %cst_12 = arith.constant dense<0.000000e+00> : vector<2xf32>
    %18 = vector.multi_reduction <add>, %17, %cst_12 [1] : vector<2x32xf32> to vector<2xf32>
    %19 = vector.shape_cast %18 : vector<2xf32> to vector<2x1xf32>
    %cst_13 = arith.constant 1.000000e-24 : f32
    %20 = vector.broadcast %cst_13 : f32 to vector<2x1xf32>
    %21 = arith.maximumf %19, %20 : vector<2x1xf32>
    %22 = math.rsqrt %21 : vector<2x1xf32>
    %23 = vector.broadcast %22 : vector<2x1xf32> to vector<2x32xf32>
    %24 = arith.mulf %16, %23 : vector<2x32xf32>
    %25 = arith.truncf %24 : vector<2x32xf32> to vector<2x32xbf16>
    %c0_14 = arith.constant 0 : index
    %c0_15 = arith.constant 0 : index
    %26 = vector.load %arg6[%c0_14, %c0_15] : memref<32x16xbf16, #tpu.memory_space<vmem>>, vector<32x16xbf16>
    %cst_16 = arith.constant dense<0.000000e+00> : vector<2x16xf32>
    %27 = tpu.matmul %25, %26, %cst_16 {dimension_numbers = #tpu.dot_dimension_numbers<[1], [0], [0], [1], [0, 0, 1, 1], [], []>} : vector<2x32xbf16>, vector<32x16xbf16>, vector<2x16xf32> -> vector<2x16xf32>
    %c0_17 = arith.constant 0 : index
    %c0_18 = arith.constant 0 : index
    %28 = vector.load %arg7[%c0_17, %c0_18] : memref<1x16xf32, #tpu.memory_space<vmem>>, vector<1x16xf32>
    %29 = vector.broadcast %28 : vector<1x16xf32> to vector<2x16xf32>
    %30 = arith.addf %27, %29 : vector<2x16xf32>
    %cst_19 = arith.constant 0.000000e+00 : f32
    %31 = vector.broadcast %cst_19 : f32 to vector<2x16xf32>
    %32 = arith.maximumf %30, %31 : vector<2x16xf32>
    %33 = arith.truncf %32 : vector<2x16xf32> to vector<2x16xbf16>
    %c0_20 = arith.constant 0 : index
    %c0_21 = arith.constant 0 : index
    %34 = vector.load %arg8[%c0_20, %c0_21] : memref<16x12xbf16, #tpu.memory_space<vmem>>, vector<16x12xbf16>
    %cst_22 = arith.constant dense<0.000000e+00> : vector<2x12xf32>
    %35 = tpu.matmul %33, %34, %cst_22 {dimension_numbers = #tpu.dot_dimension_numbers<[1], [0], [0], [1], [0, 0, 1, 1], [], []>} : vector<2x16xbf16>, vector<16x12xbf16>, vector<2x12xf32> -> vector<2x12xf32>
    %c0_23 = arith.constant 0 : index
    %c0_24 = arith.constant 0 : index
    %36 = vector.load %arg9[%c0_23, %c0_24] : memref<1x12xf32, #tpu.memory_space<vmem>>, vector<1x12xf32>
    %37 = vector.broadcast %36 : vector<1x12xf32> to vector<2x12xf32>
    %38 = arith.addf %35, %37 : vector<2x12xf32>
    %cst_25 = arith.constant 0.000000e+00 : f32
    %39 = vector.broadcast %cst_25 : f32 to vector<2x12xf32>
    %40 = arith.maximumf %38, %39 : vector<2x12xf32>
    %41 = vector.extract_strided_slice %40 {offsets = [0, 0], sizes = [2, 8], strides = [1, 1]} : vector<2x12xf32> to vector<2x8xf32>
    %42 = arith.mulf %41, %41 : vector<2x8xf32>
    %cst_26 = arith.constant dense<0.000000e+00> : vector<2xf32>
    %43 = vector.multi_reduction <add>, %42, %cst_26 [1] : vector<2x8xf32> to vector<2xf32>
    %44 = vector.shape_cast %43 : vector<2xf32> to vector<2x1xf32>
    %cst_27 = arith.constant 1.000000e-24 : f32
    %45 = vector.broadcast %cst_27 : f32 to vector<2x1xf32>
    %46 = arith.maximumf %44, %45 : vector<2x1xf32>
    %47 = math.rsqrt %46 : vector<2x1xf32>
    %48 = vector.broadcast %47 : vector<2x1xf32> to vector<2x8xf32>
    %49 = arith.mulf %41, %48 : vector<2x8xf32>
    %50 = vector.extract_strided_slice %40 {offsets = [0, 8], sizes = [2, 4], strides = [1, 1]} : vector<2x12xf32> to vector<2x4xf32>
    %cst_28 = arith.constant 0.000000e+00 : f32
    %51 = vector.broadcast %cst_28 : f32 to vector<2x68xf32>
    %52 = tpu.concatenate %24, %32, %49, %50, %51 in 1 : vector<2x32xf32>, vector<2x16xf32>, vector<2x8xf32>, vector<2x4xf32>, vector<2x68xf32> -> vector<2x128xf32>
    %53 = arith.truncf %52 : vector<2x128xf32> to vector<2x128xbf16>
    %c0_29 = arith.constant 0 : index
    %c0_30 = arith.constant 0 : index
    %54 = vector.load %arg10[%c0_29, %c0_30] : memref<2x128xbf16, #tpu.memory_space<vmem>>, vector<2x128xbf16>
    tpu.vector_store %arg10[%c0_29, %c0_30], %53 {strides = array<i32>} : memref<2x128xbf16, #tpu.memory_space<vmem>>, vector<2x128xbf16>,
    return
  }
  func.func @transform_0(%arg0: i32) -> (i32, i32) {
    %c0_i32 = arith.constant 0 : i32
    %c0_i32_0 = arith.constant 0 : i32
    return %arg0, %c0_i32 : i32, i32
  }
  func.func @transform_1(%arg0: i32) -> (i32, i32) {
    %c0_i32 = arith.constant 0 : i32
    %c0_i32_0 = arith.constant 0 : i32
    %c0_i32_1 = arith.constant 0 : i32
    return %c0_i32, %c0_i32_0 : i32, i32
  }
  func.func @transform_2(%arg0: i32) -> (i32, i32) {
    %c0_i32 = arith.constant 0 : i32
    %c0_i32_0 = arith.constant 0 : i32
    %c0_i32_1 = arith.constant 0 : i32
    return %c0_i32, %c0_i32_0 : i32, i32
  }
  func.func @transform_3(%arg0: i32) -> (i32, i32) {
    %c0_i32 = arith.constant 0 : i32
    %c0_i32_0 = arith.constant 0 : i32
    %c0_i32_1 = arith.constant 0 : i32
    return %c0_i32, %c0_i32_0 : i32, i32
  }
  func.func @transform_4(%arg0: i32) -> (i32, i32) {
    %c0_i32 = arith.constant 0 : i32
    %c0_i32_0 = arith.constant 0 : i32
    %c0_i32_1 = arith.constant 0 : i32
    return %c0_i32, %c0_i32_0 : i32, i32
  }
  func.func @transform_5(%arg0: i32) -> (i32, i32) {
    %c0_i32 = arith.constant 0 : i32
    %c0_i32_0 = arith.constant 0 : i32
    %c0_i32_1 = arith.constant 0 : i32
    return %c0_i32, %c0_i32_0 : i32, i32
  }
  func.func @transform_6(%arg0: i32) -> (i32, i32) {
    %c0_i32 = arith.constant 0 : i32
    %c0_i32_0 = arith.constant 0 : i32
    %c0_i32_1 = arith.constant 0 : i32
    return %c0_i32, %c0_i32_0 : i32, i32
  }
  func.func @transform_7(%arg0: i32) -> (i32, i32) {
    %c0_i32 = arith.constant 0 : i32
    %c0_i32_0 = arith.constant 0 : i32
    %c0_i32_1 = arith.constant 0 : i32
    return %c0_i32, %c0_i32_0 : i32, i32
  }
  func.func @transform_8(%arg0: i32) -> (i32, i32) {
    %c0_i32 = arith.constant 0 : i32
    %c0_i32_0 = arith.constant 0 : i32
    %c0_i32_1 = arith.constant 0 : i32
    return %c0_i32, %c0_i32_0 : i32, i32
  }
  func.func @transform_9(%arg0: i32) -> (i32, i32) {
    %c0_i32 = arith.constant 0 : i32
    %c0_i32_0 = arith.constant 0 : i32
    return %arg0, %c0_i32 : i32, i32
  }
}

</mosaic_0001>

<llo_original>
// kernel: tpu_custom_call.1
$region0: #{tpu_custom_call.1}
  #allocation0 [shape = 'u32[]', space=smem, size = 0x4, offset = 0x4, fixed_abs, tag = 'smem constant byte address 0x4 - core index']
  #allocation1 [shape = 'u32[144,128]{1,0:T(1,128)}', space=vmem, size = 0x12000, scoped, tag = 'internal scratch']
  %s0 = inlined_call_operand.vmem [shape: f32[2,32], index: 0, kind: input, shape index: {}]
  %s1 = inlined_call_operand.vmem [shape: bf16[32,64], index: 1, kind: input, shape index: {}]
  %s2 = inlined_call_operand.vmem [shape: f32[1,64], index: 2, kind: input, shape index: {}]
  %s3 = inlined_call_operand.vmem [shape: bf16[64,32], index: 3, kind: input, shape index: {}]
  %s4 = inlined_call_operand.vmem [shape: f32[1,32], index: 4, kind: input, shape index: {}]
  %s5 = inlined_call_operand.vmem [shape: bf16[32,16], index: 5, kind: input, shape index: {}]
  %s6 = inlined_call_operand.vmem [shape: f32[1,16], index: 6, kind: input, shape index: {}]
  %s7 = inlined_call_operand.vmem [shape: bf16[16,12], index: 7, kind: input, shape index: {}]
  %s8 = inlined_call_operand.vmem [shape: f32[1,12], index: 8, kind: input, shape index: {}]
  %s9 = inlined_call_operand.hbm [shape: bf16[2,128], index: 9, kind: output, shape index: {}]
  %s10 = sld [smem:[#allocation0]]
  $region46: #{tpu_custom_call.1} parent=0
    _
  %s12 = ssub.s32 1, %s10
  %s13 = scalar_select 0, %s12, %s10
  $region1: #{tpu_custom_call.1} parent=0
    #allocation2 [shape = 'u8[512]{0}', space=vmem, size = 0x400, scoped, tag = 'output window, operand 0, single buffered']
    #allocation3 [shape = 's32[1]{0}', space=sflag, size = 0x4, scoped, tag = 'scoped memory for tpu_custom_call.1']
    %14 = vsyncpa [#allocation3], 0
    // Predicated region
    $region2: #{tpu_custom_call.1} parent=1 // pred_check
      _
    $region3: #{tpu_custom_call.1} parent=1 // pred_check_branch
      %16 = sbr.rel (0) target = $region5
    $region4: #{tpu_custom_call.1} parent=1 // pred_region
      _
    $region5: #{tpu_custom_call.1} parent=1 // pred_fallthru
      _
    // Predicated region
    $region6: #{tpu_custom_call.1} parent=1 // pred_check
      _
    $region7: #{tpu_custom_call.1} parent=1 // pred_check_branch
      %18 = sbr.rel (0) target = $region9
    $region8: #{tpu_custom_call.1} parent=1 // pred_region
      _
    $region9: #{tpu_custom_call.1} parent=1 // pred_fallthru
      _
    // Predicated region
    $region10: #{tpu_custom_call.1} parent=1 // pred_check
      _
    $region11: #{tpu_custom_call.1} parent=1 // pred_check_branch
      %20 = sbr.rel (0) target = $region13
    $region12: #{tpu_custom_call.1} parent=1 // pred_region
      _
    $region13: #{tpu_custom_call.1} parent=1 // pred_fallthru
      _
    // Predicated region
    $region14: #{tpu_custom_call.1} parent=1 // pred_check
      _
    $region15: #{tpu_custom_call.1} parent=1 // pred_check_branch
      %22 = sbr.rel (0) target = $region17
    $region16: #{tpu_custom_call.1} parent=1 // pred_region
      _
    $region17: #{tpu_custom_call.1} parent=1 // pred_fallthru
      _
    // Predicated region
    $region18: #{tpu_custom_call.1} parent=1 // pred_check
      _
    $region19: #{tpu_custom_call.1} parent=1 // pred_check_branch
      %24 = sbr.rel (0) target = $region21
    $region20: #{tpu_custom_call.1} parent=1 // pred_region
      _
    $region21: #{tpu_custom_call.1} parent=1 // pred_fallthru
      _
    // Predicated region
    $region22: #{tpu_custom_call.1} parent=1 // pred_check
      _
    $region23: #{tpu_custom_call.1} parent=1 // pred_check_branch
      %26 = sbr.rel (0) target = $region25
    $region24: #{tpu_custom_call.1} parent=1 // pred_region
      _
    $region25: #{tpu_custom_call.1} parent=1 // pred_fallthru
      _
    // Predicated region
    $region26: #{tpu_custom_call.1} parent=1 // pred_check
      _
    $region27: #{tpu_custom_call.1} parent=1 // pred_check_branch
      %28 = sbr.rel (0) target = $region29
    $region28: #{tpu_custom_call.1} parent=1 // pred_region
      _
    $region29: #{tpu_custom_call.1} parent=1 // pred_fallthru
      _
    // Predicated region
    $region30: #{tpu_custom_call.1} parent=1 // pred_check
      _
    $region31: #{tpu_custom_call.1} parent=1 // pred_check_branch
      %30 = sbr.rel (0) target = $region33
    $region32: #{tpu_custom_call.1} parent=1 // pred_region
      _
    $region33: #{tpu_custom_call.1} parent=1 // pred_fallthru
      _
    // Predicated region
    $region34: #{tpu_custom_call.1} parent=1 // pred_check
      _
    $region35: #{tpu_custom_call.1} parent=1 // pred_check_branch
      %32 = sbr.rel (0) target = $region37
    $region36: #{tpu_custom_call.1} parent=1 // pred_region
      _
    $region37: #{tpu_custom_call.1} parent=1 // pred_fallthru
      _
    %v34 = vld [vmem:[%s0] sm:$0x3]
    %v35 = vpack.c.bf16 %v34, %v34
    %v36 = vld [vmem:[%s1] sm:$0xf]
    %v37 = vld [vmem:[%s1 + $0x4] sm:$0xf]
    %v38 = vld [vmem:[%s1 + $0x8] sm:$0xf]
    %v39 = vld [vmem:[%s1 + $0xc] sm:$0xf]
    %v40 = vld [vmem:[%s2] sm:$0x1]
    %v42 = vlaneseq
    %v43 = vshrl.u32 %v42, 7
    %v44 = vsub.s32 0, %v43
    %v45 = vrot.slane %v40, %v44
    %v51 = vunpack.c.l.b16 %v36
    %v52 = vunpack.c.l.b16 %v37
    %v53 = vunpack.c.l.b16 %v38
    %v54 = vunpack.c.l.b16 %v39
    %v55 = vpack.c.b16 %v52, %v51
    %v56 = vpack.c.b16 %v54, %v53
    %vm59 = vcmask 261120
    %v61 = vsel %vm59, %v35, 0
    %63 = vmatprep.subr.bf16.mxu0 0
    %64 = vmatpush1.bf16.msra.mxu0 %v55
    %65 = vmatprep.subr.bf16.mxu0 0
    %66 = vmatpush1.bf16.msra.mxu0 %v56
    %67 = vmatprep.subr.bf16.mxu0 0
    %68 = vmatpush1.bf16.msra.mxu0 0
    %69 = vmatprep.subr.bf16.mxu0 0
    %70 = vmatpush1.bf16.msra.mxu0 0
    %71 = vmatprep.subr.bf16.mxu0 0
    %72 = vmatpush1.bf16.msra.mxu0 0
    %73 = vmatprep.subr.bf16.mxu0 0
    %74 = vmatpush1.bf16.msra.mxu0 0
    %75 = vmatprep.subr.bf16.mxu0 0
    %76 = vmatpush1.bf16.msra.mxu0 0
    %77 = vmatprep.subr.bf16.mxu0 0
    %78 = vmatpush1.bf16.msra.mxu0 0
    %79 = vmatprep.subr.bf16.mxu0 0
    %80 = vmatpush1.bf16.msra.mxu0 0
    %81 = vmatprep.subr.bf16.mxu0 0
    %82 = vmatpush1.bf16.msra.mxu0 0
    %83 = vmatprep.subr.bf16.mxu0 0
    %84 = vmatpush1.bf16.msra.mxu0 0
    %85 = vmatprep.subr.bf16.mxu0 0
    %86 = vmatpush1.bf16.msra.mxu0 0
    %87 = vmatprep.subr.bf16.mxu0 0
    %88 = vmatpush1.bf16.msra.mxu0 0
    %89 = vmatprep.subr.bf16.mxu0 0
    %90 = vmatpush1.bf16.msra.mxu0 0
    %91 = vmatprep.subr.bf16.mxu0 0
    %92 = vmatpush1.bf16.msra.mxu0 0
    %93 = vmatprep.subr.bf16.mxu0 0
    %94 = vmatpush1.bf16.msra.mxu0 0
    %95 = vmatprep.mubr.bf16.mxu0 0
    %96 = vmatmul.mubr.bf16.gmra.mrb[0].mxu0 %v61
    %v97 = vpop.f32.mrb[0].mxu0
    %v98 = vadd.f32 %v45, %v97
    %v99 = vpop.f32.mrb[0].mxu0
    %v100 = vpop.f32.mrb[0].mxu0
    %v101 = vpop.f32.mrb[0].mxu0
    %102 = vdwg.mxu0
    %v103 = vmax.f32 %v98, 0.0
    %v104 = vpack.c.bf16 %v103, %v103
    %v105 = vld [vmem:[%s3] sm:$0xf]
    %v106 = vld [vmem:[%s3 + $0x4] sm:$0xf]
    %v107 = vld [vmem:[%s3 + $0x8] sm:$0xf]
    %v108 = vld [vmem:[%s3 + $0xc] sm:$0xf]
    %v109 = vld [vmem:[%s3 + $0x10] sm:$0xf]
    %v110 = vld [vmem:[%s3 + $0x14] sm:$0xf]
    %v111 = vld [vmem:[%s3 + $0x18] sm:$0xf]
    %v112 = vld [vmem:[%s3 + $0x1c] sm:$0xf]
    %v113 = vld [vmem:[%s4] sm:$0x1]
    %v115 = vlaneseq
    %v116 = vshrl.u32 %v115, 7
    %v117 = vsub.s32 0, %v116
    %v118 = vrot.slane %v113, %v117
    %v128 = vunpack.c.l.b16 %v105
    %v129 = vunpack.c.l.b16 %v106
    %v130 = vunpack.c.l.b16 %v107
    %v131 = vunpack.c.l.b16 %v108
    %v132 = vunpack.c.l.b16 %v109
    %v133 = vunpack.c.l.b16 %v110
    %v134 = vunpack.c.l.b16 %v111
    %v135 = vunpack.c.l.b16 %v112
    %v136 = vpack.c.b16 %v129, %v128
    %v137 = vpack.c.b16 %v131, %v130
    %v138 = vpack.c.b16 %v133, %v132
    %v139 = vpack.c.b16 %v135, %v134
    %vm144 = vcmask 523264
    %v146 = vsel %vm144, %v104, 0
    %148 = vmatprep.subr.bf16.mxu0 0
    %149 = vmatpush1.bf16.msra.mxu0 %v136
    %150 = vmatprep.subr.bf16.mxu0 0
    %151 = vmatpush1.bf16.msra.mxu0 %v137
    %152 = vmatprep.subr.bf16.mxu0 0
    %153 = vmatpush1.bf16.msra.mxu0 %v138
    %154 = vmatprep.subr.bf16.mxu0 0
    %155 = vmatpush1.bf16.msra.mxu0 %v139
    %156 = vmatprep.subr.bf16.mxu0 0
    %157 = vmatpush1.bf16.msra.mxu0 0
    %158 = vmatprep.subr.bf16.mxu0 0
    %159 = vmatpush1.bf16.msra.mxu0 0
    %160 = vmatprep.subr.bf16.mxu0 0
    %161 = vmatpush1.bf16.msra.mxu0 0
    %162 = vmatprep.subr.bf16.mxu0 0
    %163 = vmatpush1.bf16.msra.mxu0 0
    %164 = vmatprep.subr.bf16.mxu0 0
    %165 = vmatpush1.bf16.msra.mxu0 0
    %166 = vmatprep.subr.bf16.mxu0 0
    %167 = vmatpush1.bf16.msra.mxu0 0
    %168 = vmatprep.subr.bf16.mxu0 0
    %169 = vmatpush1.bf16.msra.mxu0 0
    %170 = vmatprep.subr.bf16.mxu0 0
    %171 = vmatpush1.bf16.msra.mxu0 0
    %172 = vmatprep.subr.bf16.mxu0 0
    %173 = vmatpush1.bf16.msra.mxu0 0
    %174 = vmatprep.subr.bf16.mxu0 0
    %175 = vmatpush1.bf16.msra.mxu0 0
    %176 = vmatprep.subr.bf16.mxu0 0
    %177 = vmatpush1.bf16.msra.mxu0 0
    %178 = vmatprep.subr.bf16.mxu0 0
    %179 = vmatpush1.bf16.msra.mxu0 0
    %180 = vmatprep.mubr.bf16.mxu0 0
    %181 = vmatmul.mubr.bf16.gmra.mrb[0].mxu0 %v146
    %v182 = vpop.f32.mrb[0].mxu0
    %v183 = vadd.f32 %v118, %v182
    %v184 = vpop.f32.mrb[0].mxu0
    %v185 = vpop.f32.mrb[0].mxu0
    %v186 = vpop.f32.mrb[0].mxu0
    %187 = vdwg.mxu0
    %v188 = vmax.f32 %v183, 0.0
    %v189 = vmul.f32 %v188, %v188
    %vm190 = vcmask 254976
    %v191 = vsel %vm190, %v189, 0.0
    %192 = vadd.xlane.f32.xlu0 %v191
    %v193 = vpop.xlane.xlu0 %192
    %v194 = vmax.f32 %v193, 1e-24
    %v195 = vrsqrt.pop %v194
    %v196 = vmul.f32 %v188, %v195
    %v197 = vpack.c.bf16 %v196, %v196
    %v198 = vld [vmem:[%s5] sm:$0xf]
    %v199 = vld [vmem:[%s5 + $0x4] sm:$0xf]
    %v200 = vld [vmem:[%s5 + $0x8] sm:$0xf]
    %v201 = vld [vmem:[%s5 + $0xc] sm:$0xf]
    %v202 = vld [vmem:[%s6] sm:$0x1]
    %v204 = vlaneseq
    %v205 = vshrl.u32 %v204, 7
    %v206 = vsub.s32 0, %v205
    %v207 = vrot.slane %v202, %v206
    %v213 = vunpack.c.l.b16 %v198
    %v214 = vunpack.c.l.b16 %v199
    %v215 = vunpack.c.l.b16 %v200
    %v216 = vunpack.c.l.b16 %v201
    %v217 = vpack.c.b16 %v214, %v213
    %v218 = vpack.c.b16 %v216, %v215
    %v222 = vsel %vm59, %v197, 0
    %224 = vmatprep.subr.bf16.mxu0 0
    %225 = vmatpush1.bf16.msra.mxu0 %v217
    %226 = vmatprep.subr.bf16.mxu0 0
    %227 = vmatpush1.bf16.msra.mxu0 %v218
    %228 = vmatprep.subr.bf16.mxu0 0
    %229 = vmatpush1.bf16.msra.mxu0 0
    %230 = vmatprep.subr.bf16.mxu0 0
    %231 = vmatpush1.bf16.msra.mxu0 0
    %232 = vmatprep.subr.bf16.mxu0 0
    %233 = vmatpush1.bf16.msra.mxu0 0
    %234 = vmatprep.subr.bf16.mxu0 0
    %235 = vmatpush1.bf16.msra.mxu0 0
    %236 = vmatprep.subr.bf16.mxu0 0
    %237 = vmatpush1.bf16.msra.mxu0 0
    %238 = vmatprep.subr.bf16.mxu0 0
    %239 = vmatpush1.bf16.msra.mxu0 0
    %240 = vmatprep.subr.bf16.mxu0 0
    %241 = vmatpush1.bf16.msra.mxu0 0
    %242 = vmatprep.subr.bf16.mxu0 0
    %243 = vmatpush1.bf16.msra.mxu0 0
    %244 = vmatprep.subr.bf16.mxu0 0
    %245 = vmatpush1.bf16.msra.mxu0 0
    %246 = vmatprep.subr.bf16.mxu0 0
    %247 = vmatpush1.bf16.msra.mxu0 0
    %248 = vmatprep.subr.bf16.mxu0 0
    %249 = vmatpush1.bf16.msra.mxu0 0
    %250 = vmatprep.subr.bf16.mxu0 0
    %251 = vmatpush1.bf16.msra.mxu0 0
    %252 = vmatprep.subr.bf16.mxu0 0
    %253 = vmatpush1.bf16.msra.mxu0 0
    %254 = vmatprep.subr.bf16.mxu0 0
    %255 = vmatpush1.bf16.msra.mxu0 0
    %256 = vmatprep.mubr.bf16.mxu0 0
    %257 = vmatmul.mubr.bf16.gmra.mrb[0].mxu0 %v222
    %v258 = vpop.f32.mrb[0].mxu0
    %v259 = vadd.f32 %v207, %v258
    %v260 = vpop.f32.mrb[0].mxu0
    %v261 = vpop.f32.mrb[0].mxu0
    %v262 = vpop.f32.mrb[0].mxu0
    %263 = vdwg.mxu0
    %v264 = vmax.f32 %v259, 0.0
    %v265 = vpack.c.bf16 %v264, %v264
    %v266 = vld [vmem:[%s7] sm:$0xf]
    %v267 = vld [vmem:[%s7 + $0x4] sm:$0xf]
    %v268 = vld [vmem:[%s8] sm:$0x1]
    %v270 = vlaneseq
    %v271 = vshrl.u32 %v270, 7
    %v272 = vsub.s32 0, %v271
    %v273 = vrot.slane %v268, %v272
    %v277 = vunpack.c.l.b16 %v266
    %v278 = vunpack.c.l.b16 %v267
    %v279 = vpack.c.b16 %v278, %v277
    %vm281 = vcmask 130048
    %v283 = vsel %vm281, %v265, 0
    %285 = vmatprep.subr.bf16.mxu0 0
    %286 = vmatpush1.bf16.msra.mxu0 %v279
    %287 = vmatprep.subr.bf16.mxu0 0
    %288 = vmatpush1.bf16.msra.mxu0 0
    %289 = vmatprep.subr.bf16.mxu0 0
    %290 = vmatpush1.bf16.msra.mxu0 0
    %291 = vmatprep.subr.bf16.mxu0 0
    %292 = vmatpush1.bf16.msra.mxu0 0
    %293 = vmatprep.subr.bf16.mxu0 0
    %294 = vmatpush1.bf16.msra.mxu0 0
    %295 = vmatprep.subr.bf16.mxu0 0
    %296 = vmatpush1.bf16.msra.mxu0 0
    %297 = vmatprep.subr.bf16.mxu0 0
    %298 = vmatpush1.bf16.msra.mxu0 0
    %299 = vmatprep.subr.bf16.mxu0 0
    %300 = vmatpush1.bf16.msra.mxu0 0
    %301 = vmatprep.subr.bf16.mxu0 0
    %302 = vmatpush1.bf16.msra.mxu0 0
    %303 = vmatprep.subr.bf16.mxu0 0
    %304 = vmatpush1.bf16.msra.mxu0 0
    %305 = vmatprep.subr.bf16.mxu0 0
    %306 = vmatpush1.bf16.msra.mxu0 0
    %307 = vmatprep.subr.bf16.mxu0 0
    %308 = vmatpush1.bf16.msra.mxu0 0
    %309 = vmatprep.subr.bf16.mxu0 0
    %310 = vmatpush1.bf16.msra.mxu0 0
    %311 = vmatprep.subr.bf16.mxu0 0
    %312 = vmatpush1.bf16.msra.mxu0 0
    %313 = vmatprep.subr.bf16.mxu0 0
    %314 = vmatpush1.bf16.msra.mxu0 0
    %315 = vmatprep.subr.bf16.mxu0 0
    %316 = vmatpush1.bf16.msra.mxu0 0
    %317 = vmatprep.mubr.bf16.mxu0 0
    %318 = vmatmul.mubr.bf16.gmra.mrb[0].mxu0 %v283
    %v319 = vpop.f32.mrb[0].mxu0
    %v320 = vadd.f32 %v273, %v319
    %v321 = vpop.f32.mrb[0].mxu0
    %v322 = vpop.f32.mrb[0].mxu0
    %v323 = vpop.f32.mrb[0].mxu0
    %324 = vdwg.mxu0
    %v325 = vmax.f32 %v320, 0.0
    %v326 = vmul.f32 %v325, %v325
    %vm327 = vcmask 58368
    %v328 = vsel %vm327, %v326, 0.0
    %329 = vadd.xlane.f32.xlu0 %v328
    %v330 = vpop.xlane.xlu0 %329
    %v331 = vmax.f32 %v330, 1e-24
    %v332 = vrsqrt.pop %v331
    %v333 = vmul.f32 %v325, %v332
    %335 = vrot.lane.b32.xlu0 %v264, 32
    %v336 = vpop.permute.xlu0 %335
    %339 = vrot.lane.b32.xlu0 %v333, 48
    %v340 = vpop.permute.xlu0 %339
    %343 = vrot.lane.b32.xlu0 %v325, 48
    %v344 = vpop.permute.xlu0 %343
    %v346 = vsel %vm59, %v196, %v336
    %vm347 = vcmask 392192
    %v348 = vsel %vm347, %v346, %v340
    %vm349 = vcmask 457728
    %v350 = vsel %vm349, %v348, %v344
    %vm351 = vcmask 490496
    %v352 = vsel %vm351, %v350, 0.0
    %v353 = vpack.c.bf16 %v352, %v352
    %354 = vst [vmem:[#allocation2] sm:$0x1] %v353
    // Predicated region
    $region38: #{tpu_custom_call.1} parent=1 // pred_check
      _
    $region39: #{tpu_custom_call.1} parent=1 // pred_check_branch
      %356 = sbr.rel (0) target = $region41
    $region40: #{tpu_custom_call.1} parent=1 // pred_region
      %s358 = ssub.s32 16, 16
      %359 = vsyncadd [#allocation3], %s358
      %s361 = sshll.u32 [#allocation2], 4
      %s362 = int_to_ptr.vmem [resolvable:$true] %s361
      %364 = dma.vmem_to_hbm [thread:$0]  %s362, 16, %s9, [#allocation3]
    $region41: #{tpu_custom_call.1} parent=1 // pred_fallthru
      _
    // Predicated region
    $region42: #{tpu_custom_call.1} parent=1 // pred_check
      _
    $region43: #{tpu_custom_call.1} parent=1 // pred_check_branch
      %366 = sbr.rel (0) target = $region45
    $region44: #{tpu_custom_call.1} parent=1 // pred_region
      %367 = dma.done [#allocation3], 16
    $region45: #{tpu_custom_call.1} parent=1 // pred_fallthru
      _
    %368 = vsyncpa [#allocation3], 1

</llo_original>
